<compile_context>
chip_gen: v7x
topology: tpu7x:2x2x1
jax: 0.10.0
libtpu: 0.0.40
codegen_flags: <defaults>
</compile_context>

<pallas_src>
import functools
import math

import jax
import jax.numpy as jnp
from jax.experimental import pallas as pl
from jax.experimental.pallas import tpu as pltpu

HIDDEN = 32
SUBLANE = 8    # f32 sublane granularity
LANE = 128     # lane width


def _round_up(n, m):
    return ((n + m - 1) // m) * m


# ---------------------------------------------------------------------------
# Kernel 1: whole-sequence input projection  XW = X @ Wx + b  (one MXU pass,
# hoisted off the recurrent critical path).
# ---------------------------------------------------------------------------
def x_project_kernel(x_ref, w_ref, b_ref, o_ref):
    o_ref[...] = (jnp.dot(x_ref[...], w_ref[...],
                          preferred_element_type=jnp.float32)
                  + b_ref[...]).astype(o_ref.dtype)


def x_project(x_flat, wx, b):
    m = x_flat.shape[0]
    n = wx.shape[1]
    vmem = pl.BlockSpec(memory_space=pltpu.MemorySpace.VMEM)
    # TODO(synk): for long sequences tile the row axis with grid=(M//tm,) and a
    # "parallel" dimension so it also spreads across v7x's two TensorCores.
    return pl.pallas_call(
        x_project_kernel,
        out_shape=jax.ShapeDtypeStruct((m, n), jnp.float32),
        in_specs=[vmem, vmem, vmem],
        out_specs=vmem,
    )(x_flat, wx, b)


# ---------------------------------------------------------------------------
# Kernel 2: the recurrence — T steps inside a single pallas_call.
# ---------------------------------------------------------------------------
def rnn_recurrence_kernel(xw_ref, h0_ref, wh_ref, out_ref, h_scr, *, out_size):
    t = pl.program_id(0)

    @pl.when(t == 0)
    def _():
        h_scr[...] = h0_ref[...]

    # fused[:, :HIDDEN]           == i2h(cat(x_t, h_{t-1}))
    # fused[:, HIDDEN:HIDDEN+out] == i2o_1(i2o(cat(x_t, h_{t-1})))  (folded)
    # fused[:, HIDDEN+out:]       == 0 (lane padding)
    fused = xw_ref[0] + jnp.dot(h_scr[...], wh_ref[...],
                                preferred_element_type=jnp.float32)

    # Carry for the next step.  Only lanes [0, HIDDEN) feed back (wh rows
    # >= HIDDEN are zero), so the full lane-dense tile is carried unsliced.
    h_scr[...] = fused

    # log_softmax over the logit lanes only (masked lane reduction).
    lane = jax.lax.broadcasted_iota(jnp.int32, fused.shape, 1)
    is_logit = (lane >= HIDDEN) & (lane < HIDDEN + out_size)
    neg = jnp.float32(-1e30)
    masked = jnp.where(is_logit, fused, neg)
    m = jnp.max(masked, axis=1, keepdims=True)
    e = jnp.exp(masked - m)                       # non-logit lanes -> exp(-big)=0
    lse = jnp.log(jnp.sum(e, axis=1, keepdims=True))
    logp = fused - m - lse

    # Single lane-dense (unmasked, full-vreg-width) store:
    #   lanes [0, HIDDEN)          -> new hidden
    #   lanes [HIDDEN, HIDDEN+out) -> log-probs
    out_ref[0] = jnp.where(is_logit, logp, fused).astype(out_ref.dtype)


def rnn_sequence(x_seq, h0, params):
    """Apply the module forward over a sequence.

    x_seq: (T, B, input_size), h0: (B, HIDDEN)
    returns (log_probs (T, B, out), hidden_seq (T, B, HIDDEN)).
    """
    T, B, _ = x_seq.shape
    out_size = params["out_size"]
    n_lanes = params["wx_fused"].shape[1]

    # Pad batch to the sublane granularity once, outside the recurrent loop.
    bp = _round_up(max(B, 1), SUBLANE)
    if bp != B:
        x_seq = jnp.pad(x_seq, ((0, 0), (0, bp - B), (0, 0)))
        h0 = jnp.pad(h0, ((0, bp - B), (0, 0)))
    h0_pad = jnp.pad(h0, ((0, 0), (0, n_lanes - HIDDEN)))

    # Phase 1: whole-sequence input projection (one big matmul).
    xw = x_project(x_seq.reshape(T * bp, -1), params["wx_fused"],
                   params["b_fused"]).reshape(T, bp, n_lanes)

    # Phase 2: the recurrence, T steps inside one kernel launch.
    kernel = functools.partial(rnn_recurrence_kernel, out_size=out_size)
    combined = pl.pallas_call(
        kernel,
        out_shape=jax.ShapeDtypeStruct((T, bp, n_lanes), jnp.float32),
        grid=(T,),
        in_specs=[
            pl.BlockSpec((1, bp, n_lanes), lambda t: (t, 0, 0)),   # per-step x@Wx
            pl.BlockSpec((bp, n_lanes), lambda t: (0, 0)),         # h0 (resident)
            pl.BlockSpec((n_lanes, n_lanes), lambda t: (0, 0)),    # Wh (resident)
        ],
        out_specs=pl.BlockSpec((1, bp, n_lanes), lambda t: (t, 0, 0)),
        scratch_shapes=[pltpu.VMEM((bp, n_lanes), jnp.float32)],
        compiler_params=pltpu.CompilerParams(
            dimension_semantics=("arbitrary",)),   # recurrence: keep sequential
    )(xw, h0_pad, params["wh_full"])

    log_probs = combined[:, :B, HIDDEN:HIDDEN + out_size]
    hidden_seq = combined[:, :B, :HIDDEN]
    return log_probs, hidden_seq


def rnn_forward(x, h, params):
    """Single module-forward step: (B, in), (B, H) -> (log_probs, new_hidden)."""
    log_probs, hidden_seq = rnn_sequence(x[None], h, params)
    return log_probs[0], hidden_seq[0]


# ---------------------------------------------------------------------------
# Parameters
# ---------------------------------------------------------------------------
def init_linear(key, in_features, out_features):
    """Deterministic init mimicking nn.Linear (uniform +-1/sqrt(fan_in)).

    Weight stored transposed w.r.t. PyTorch, i.e. (in, out); bias (1, out).
    """
    kw, kb = jax.random.split(key)
    bound = 1.0 / math.sqrt(in_features)
    w = jax.random.uniform(kw, (in_features, out_features), jnp.float32,
                           minval=-bound, maxval=bound)
    b = jax.random.uniform(kb, (1, out_features), jnp.float32,
                           minval=-bound, maxval=bound)
    return w, b


def make_params(key, input_size, output_size):
    k1, k2, k3 = jax.random.split(key, 3)
    w_i2h, b_i2h = init_linear(k1, input_size + HIDDEN, HIDDEN)
    w_i2o, b_i2o = init_linear(k2, input_size + HIDDEN, HIDDEN)
    w_i2o_1, b_i2o_1 = init_linear(k3, HIDDEN, output_size)
    # i2h_1, i2h_2, i2o_2 exist in the PyTorch __init__ but are unused.

    # Fold i2o -> i2o_1 into one matrix, fuse with i2h along the output-lane
    # axis, zero-pad the lane axis to a 128-lane boundary (unmasked stores),
    # and split the (input+hidden) contraction dim so the kernel never
    # concatenates.
    w_io = w_i2o @ w_i2o_1                       # (in+H, out)
    b_io = b_i2o @ w_i2o_1 + b_i2o_1             # (1, out)
    n_real = HIDDEN + output_size
    n_lanes = _round_up(n_real, LANE)
    pad = n_lanes - n_real
    w_fused = jnp.concatenate(
        [w_i2h, w_io, jnp.zeros((input_size + HIDDEN, pad), jnp.float32)],
        axis=1)                                  # (in+H, n_lanes)
    b_fused = jnp.concatenate(
        [b_i2h, b_io, jnp.zeros((1, pad), jnp.float32)], axis=1)

    wx_fused = w_fused[:input_size]              # (in, n_lanes)
    wh = w_fused[input_size:]                    # (H,  n_lanes)
    # Full-width recurrent matrix: rows >= HIDDEN are zero so the lane-dense
    # carried state needs no lane-offset slice inside the kernel.
    wh_full = jnp.concatenate(
        [wh, jnp.zeros((n_lanes - HIDDEN, n_lanes), jnp.float32)], axis=0)

    return {
        "out_size": output_size,
        # kernel params (split / folded / lane-fused / padded)
        "wx_fused": wx_fused, "wh_full": wh_full, "b_fused": b_fused,
        # raw params kept only for the pure-JAX reference check
        "w_i2h": w_i2h, "b_i2h": b_i2h,
        "w_i2o": w_i2o, "b_i2o": b_i2o,
        "w_i2o_1": w_i2o_1, "b_i2o_1": b_i2o_1,
    }


# ---------------------------------------------------------------------------
# Pure-JAX reference following the *original* (un-folded) module math.
# ---------------------------------------------------------------------------
def rnn_reference_step(x, h, p):
    comb = jnp.concatenate([x, h], axis=1)
    new_h = comb @ p["w_i2h"] + p["b_i2h"]
    mid = comb @ p["w_i2o"] + p["b_i2o"]
    logits = mid @ p["w_i2o_1"] + p["b_i2o_1"]
    return jax.nn.log_softmax(logits, axis=1), new_h


def rnn_reference_sequence(x_seq, h0, p):
    outs, hs = [], []
    h = h0
    for t in range(x_seq.shape[0]):
        o, h = rnn_reference_step(x_seq[t], h, p)
        outs.append(o)
        hs.append(h)
    return jnp.stack(outs), jnp.stack(hs)


if __name__ == "__main__":
    key = jax.random.PRNGKey(0)
    k_params, k_x = jax.random.split(key)

    batch = 2
    seq_len = 8
    input_size = 16
    output_size = 8

    params = make_params(k_params, input_size, output_size)
    x_seq = jax.random.normal(k_x, (seq_len, batch, input_size), jnp.float32)
    hidden0 = jnp.zeros((batch, HIDDEN), jnp.float32)  # initHidden, broadcast to batch

    # Sequence kernel (timestep loop inside one pallas_call).
    log_probs, hidden_seq = rnn_sequence(x_seq, hidden0, params)
    log_probs = jax.block_until_ready(log_probs)
    hidden_seq = jax.block_until_ready(hidden_seq)

    ref_lp, ref_h = rnn_reference_sequence(x_seq, hidden0, params)
    # Weight folding slightly changes fp rounding vs. the two-stage reference.
    assert jnp.allclose(log_probs, ref_lp, atol=1e-4, rtol=1e-4), \
        float(jnp.max(jnp.abs(log_probs - ref_lp)))
    assert jnp.allclose(hidden_seq, ref_h, atol=1e-4, rtol=1e-4), \
        float(jnp.max(jnp.abs(hidden_seq - ref_h)))

    # Single-step API matching the module's forward signature.
    out1, h1 = rnn_forward(x_seq[0], hidden0, params)
    out1 = jax.block_until_ready(out1)
    ref_o1, ref_h1 = rnn_reference_step(x_seq[0], hidden0, params)
    assert jnp.allclose(out1, ref_o1, atol=1e-4, rtol=1e-4)
    assert jnp.allclose(h1, ref_h1, atol=1e-4, rtol=1e-4)

    print("KERNEL_OK")
</pallas_src>

<mosaic_0001>
module attributes {stable_mosaic.version = 11 : i64} {
  func.func @x_project_kernel(%arg0: memref<64x16xf32, #tpu.memory_space<vmem>>, %arg1: memref<16x128xf32, #tpu.memory_space<vmem>>, %arg2: memref<1x128xf32, #tpu.memory_space<vmem>>, %arg3: memref<64x128xf32, #tpu.memory_space<vmem>>) attributes {dimension_semantics = [], scalar_prefetch = 0 : i64, scratch_operands = 0 : i64, tpu.core_type = #tpu.core_type<tc>} {
    %c0 = arith.constant 0 : index
    %c0_0 = arith.constant 0 : index
    %0 = vector.load %arg0[%c0, %c0_0] : memref<64x16xf32, #tpu.memory_space<vmem>>, vector<64x16xf32>
    %c0_1 = arith.constant 0 : index
    %c0_2 = arith.constant 0 : index
    %1 = vector.load %arg1[%c0_1, %c0_2] : memref<16x128xf32, #tpu.memory_space<vmem>>, vector<16x128xf32>
    %cst = arith.constant dense<0.000000e+00> : vector<64x128xf32>
    %2 = tpu.matmul %0, %1, %cst {dimension_numbers = #tpu.dot_dimension_numbers<[1], [0], [0], [1], [0, 0, 1, 1], [], []>} : vector<64x16xf32>, vector<16x128xf32>, vector<64x128xf32> -> vector<64x128xf32>
    %c0_3 = arith.constant 0 : index
    %c0_4 = arith.constant 0 : index
    %3 = vector.load %arg2[%c0_3, %c0_4] : memref<1x128xf32, #tpu.memory_space<vmem>>, vector<1x128xf32>
    %4 = vector.broadcast %3 : vector<1x128xf32> to vector<64x128xf32>
    %5 = arith.addf %2, %4 : vector<64x128xf32>
    %c0_5 = arith.constant 0 : index
    %c0_6 = arith.constant 0 : index
    %6 = vector.load %arg3[%c0_5, %c0_6] : memref<64x128xf32, #tpu.memory_space<vmem>>, vector<64x128xf32>
    tpu.vector_store %arg3[%c0_5, %c0_6], %5 {strides = array<i32>} : memref<64x128xf32, #tpu.memory_space<vmem>>, vector<64x128xf32>,
    return
  }
}

</mosaic_0001>

<llo_original>
// kernel: tpu_custom_call.1
$region0: #{tpu_custom_call.1}
  #allocation0 [shape = 'u32[]', space=smem, size = 0x4, offset = 0x4, fixed_abs, tag = 'smem constant byte address 0x4 - core index']
  #allocation1 [shape = 'u32[144,128]{1,0:T(1,128)}', space=vmem, size = 0x12000, scoped, tag = 'internal scratch']
  %s0 = inlined_call_operand.vmem [shape: f32[64,16], index: 0, kind: input, shape index: {}]
  %s1 = inlined_call_operand.vmem [shape: f32[16,128], index: 1, kind: input, shape index: {}]
  %s2 = inlined_call_operand.vmem [shape: f32[1,128], index: 2, kind: input, shape index: {}]
  %s3 = inlined_call_operand.hbm [shape: f32[64,128], index: 3, kind: output, shape index: {}]
  %s4 = sld [smem:[#allocation0]]
  $region22: #{tpu_custom_call.1} parent=0
    _
  %s6 = ssub.s32 1, %s4
  %s7 = scalar_select 0, %s6, %s4
  $region1: #{tpu_custom_call.1} parent=0
    #allocation2 [shape = 'u8[32768]{0}', space=vmem, size = 0x8000, scoped, tag = 'output window, operand 0, single buffered']
    #allocation3 [shape = 's32[1]{0}', space=sflag, size = 0x4, scoped, tag = 'scoped memory for tpu_custom_call.1']
    %8 = vsyncpa [#allocation3], 0
    // Predicated region
    $region2: #{tpu_custom_call.1} parent=1 // pred_check
      _
    $region3: #{tpu_custom_call.1} parent=1 // pred_check_branch
      %10 = sbr.rel (0) target = $region5
    $region4: #{tpu_custom_call.1} parent=1 // pred_region
      _
    $region5: #{tpu_custom_call.1} parent=1 // pred_fallthru
      _
    // Predicated region
    $region6: #{tpu_custom_call.1} parent=1 // pred_check
      _
    $region7: #{tpu_custom_call.1} parent=1 // pred_check_branch
      %12 = sbr.rel (0) target = $region9
    $region8: #{tpu_custom_call.1} parent=1 // pred_region
      _
    $region9: #{tpu_custom_call.1} parent=1 // pred_fallthru
      _
    // Predicated region
    $region10: #{tpu_custom_call.1} parent=1 // pred_check
      _
    $region11: #{tpu_custom_call.1} parent=1 // pred_check_branch
      %14 = sbr.rel (0) target = $region13
    $region12: #{tpu_custom_call.1} parent=1 // pred_region
      _
    $region13: #{tpu_custom_call.1} parent=1 // pred_fallthru
      _
    %v15 = vld [vmem:[%s0] sm:$0xff]
    %v16 = vld [vmem:[%s0 + $0x8] sm:$0xff]
    %v17 = vld [vmem:[%s0 + $0x10] sm:$0xff]
    %v18 = vld [vmem:[%s0 + $0x18] sm:$0xff]
    %v19 = vld [vmem:[%s0 + $0x20] sm:$0xff]
    %v20 = vld [vmem:[%s0 + $0x28] sm:$0xff]
    %v21 = vld [vmem:[%s0 + $0x30] sm:$0xff]
    %v22 = vld [vmem:[%s0 + $0x38] sm:$0xff]
    %v23 = vld [vmem:[%s1] sm:$0xff]
    %v24 = vld [vmem:[%s1 + $0x8] sm:$0xff]
    %v25 = vld [vmem:[%s2] sm:$0x1]
    %v27 = vlaneseq
    %v28 = vshrl.u32 %v27, 7
    %v29 = vsub.s32 0, %v28
    %v30 = vrot.slane %v25, %v29
    %vm32 = vcmask 130048
    %v34 = vsel %vm32, %v15, 0
    %v37 = vsel %vm32, %v16, 0
    %v40 = vsel %vm32, %v17, 0
    %v43 = vsel %vm32, %v18, 0
    %v46 = vsel %vm32, %v19, 0
    %v49 = vsel %vm32, %v20, 0
    %v52 = vsel %vm32, %v21, 0
    %v55 = vsel %vm32, %v22, 0
    %57 = vmatprep.subr.mxu0 0.0
    %58 = vmatpush1.msra.mxu0 %v23
    %59 = vmatprep.subr.mxu0 0.0
    %60 = vmatpush1.msra.mxu0 %v24
    %61 = vmatprep.subr.mxu0 0.0
    %62 = vmatpush1.msra.mxu0 0.0
    %63 = vmatprep.subr.mxu0 0.0
    %64 = vmatpush1.msra.mxu0 0.0
    %65 = vmatprep.subr.mxu0 0.0
    %66 = vmatpush1.msra.mxu0 0.0
    %67 = vmatprep.subr.mxu0 0.0
    %68 = vmatpush1.msra.mxu0 0.0
    %69 = vmatprep.subr.mxu0 0.0
    %70 = vmatpush1.msra.mxu0 0.0
    %71 = vmatprep.subr.mxu0 0.0
    %72 = vmatpush1.msra.mxu0 0.0
    %73 = vmatprep.subr.mxu0 0.0
    %74 = vmatpush1.msra.mxu0 0.0
    %75 = vmatprep.subr.mxu0 0.0
    %76 = vmatpush1.msra.mxu0 0.0
    %77 = vmatprep.subr.mxu0 0.0
    %78 = vmatpush1.msra.mxu0 0.0
    %79 = vmatprep.subr.mxu0 0.0
    %80 = vmatpush1.msra.mxu0 0.0
    %81 = vmatprep.subr.mxu0 0.0
    %82 = vmatpush1.msra.mxu0 0.0
    %83 = vmatprep.subr.mxu0 0.0
    %84 = vmatpush1.msra.mxu0 0.0
    %85 = vmatprep.subr.mxu0 0.0
    %86 = vmatpush1.msra.mxu0 0.0
    %87 = vmatprep.subr.mxu0 0.0
    %88 = vmatpush1.msra.mxu0 0.0
    %89 = vmatprep.subr.mxu0 0.0
    %90 = vmatpush1.msra.mxu0 0.0
    %91 = vmatprep.subr.mxu0 0.0
    %92 = vmatpush1.msra.mxu0 0.0
    %93 = vmatprep.subr.mxu0 0.0
    %94 = vmatpush1.msra.mxu0 0.0
    %95 = vmatprep.subr.mxu0 0.0
    %96 = vmatpush1.msra.mxu0 0.0
    %97 = vmatprep.subr.mxu0 0.0
    %98 = vmatpush1.msra.mxu0 0.0
    %99 = vmatprep.subr.mxu0 0.0
    %100 = vmatpush1.msra.mxu0 0.0
    %101 = vmatprep.subr.mxu0 0.0
    %102 = vmatpush1.msra.mxu0 0.0
    %103 = vmatprep.subr.mxu0 0.0
    %104 = vmatpush1.msra.mxu0 0.0
    %105 = vmatprep.subr.mxu0 0.0
    %106 = vmatpush1.msra.mxu0 0.0
    %107 = vmatprep.subr.mxu0 0.0
    %108 = vmatpush1.msra.mxu0 0.0
    %109 = vmatprep.subr.mxu0 0.0
    %110 = vmatpush1.msra.mxu0 0.0
    %111 = vmatprep.subr.mxu0 0.0
    %112 = vmatpush1.msra.mxu0 0.0
    %113 = vmatprep.subr.mxu0 0.0
    %114 = vmatpush1.msra.mxu0 0.0
    %115 = vmatprep.subr.mxu0 0.0
    %116 = vmatpush1.msra.mxu0 0.0
    %117 = vmatprep.subr.mxu0 0.0
    %118 = vmatpush1.msra.mxu0 0.0
    %119 = vmatprep.subr.mxu0 0.0
    %120 = vmatpush1.msra.mxu0 0.0
    %121 = vmatprep.mubr.f32.mxu0 0.0
    %122 = vmatmul.mubr.f32.gmra.mrb[0].mxu0 %v34
    %v123 = vpop.f32.mrb[0].mxu0
    %v124 = vadd.f32 %v30, %v123
    %v125 = vpop.f32.mrb[0].mxu0
    %126 = vmatprep.mubr.f32.mxu0 0.0
    %127 = vmatmul.mubr.f32.gmra.mrb[0].mxu0 %v37
    %v128 = vpop.f32.mrb[0].mxu0
    %v129 = vadd.f32 %v30, %v128
    %v130 = vpop.f32.mrb[0].mxu0
    %131 = vmatprep.mubr.f32.mxu0 0.0
    %132 = vmatmul.mubr.f32.gmra.mrb[0].mxu0 %v40
    %v133 = vpop.f32.mrb[0].mxu0
    %v134 = vadd.f32 %v30, %v133
    %v135 = vpop.f32.mrb[0].mxu0
    %136 = vmatprep.mubr.f32.mxu0 0.0
    %137 = vmatmul.mubr.f32.gmra.mrb[0].mxu0 %v43
    %v138 = vpop.f32.mrb[0].mxu0
    %v139 = vadd.f32 %v30, %v138
    %v140 = vpop.f32.mrb[0].mxu0
    %141 = vmatprep.mubr.f32.mxu0 0.0
    %142 = vmatmul.mubr.f32.gmra.mrb[0].mxu0 %v46
    %v143 = vpop.f32.mrb[0].mxu0
    %v144 = vadd.f32 %v30, %v143
    %v145 = vpop.f32.mrb[0].mxu0
    %146 = vmatprep.mubr.f32.mxu0 0.0
    %147 = vmatmul.mubr.f32.gmra.mrb[0].mxu0 %v49
    %v148 = vpop.f32.mrb[0].mxu0
    %v149 = vadd.f32 %v30, %v148
    %v150 = vpop.f32.mrb[0].mxu0
    %151 = vmatprep.mubr.f32.mxu0 0.0
    %152 = vmatmul.mubr.f32.gmra.mrb[0].mxu0 %v52
    %v153 = vpop.f32.mrb[0].mxu0
    %v154 = vadd.f32 %v30, %v153
    %v155 = vpop.f32.mrb[0].mxu0
    %156 = vmatprep.mubr.f32.mxu0 0.0
    %157 = vmatmul.mubr.f32.gmra.mrb[0].mxu0 %v55
    %v158 = vpop.f32.mrb[0].mxu0
    %v159 = vadd.f32 %v30, %v158
    %v160 = vpop.f32.mrb[0].mxu0
    %161 = vdwg.mxu0
    %162 = vst [vmem:[#allocation2] sm:$0xff] %v124
    %163 = vst [vmem:[#allocation2 + $0x8] sm:$0xff] %v129
    %164 = vst [vmem:[#allocation2 + $0x10] sm:$0xff] %v134
    %165 = vst [vmem:[#allocation2 + $0x18] sm:$0xff] %v139
    %166 = vst [vmem:[#allocation2 + $0x20] sm:$0xff] %v144
    %167 = vst [vmem:[#allocation2 + $0x28] sm:$0xff] %v149
    %168 = vst [vmem:[#allocation2 + $0x30] sm:$0xff] %v154
    %169 = vst [vmem:[#allocation2 + $0x38] sm:$0xff] %v159
    // Predicated region
    $region14: #{tpu_custom_call.1} parent=1 // pred_check
      _
    $region15: #{tpu_custom_call.1} parent=1 // pred_check_branch
      %171 = sbr.rel (0) target = $region17
    $region16: #{tpu_custom_call.1} parent=1 // pred_region
      %s173 = ssub.s32 1024, 1024
      %174 = vsyncadd [#allocation3], %s173
      %s175 = sshll.u32 [#allocation2], 4
      %s176 = int_to_ptr.vmem [resolvable:$true] %s175
      %181 = dma.vmem_to_hbm [thread:$0]  %s176, 1024, %s3, [#allocation3], 128, 128, 8
    $region17: #{tpu_custom_call.1} parent=1 // pred_fallthru
      _
    // Predicated region
    $region18: #{tpu_custom_call.1} parent=1 // pred_check
      _
    $region19: #{tpu_custom_call.1} parent=1 // pred_check_branch
      %183 = sbr.rel (0) target = $region21
    $region20: #{tpu_custom_call.1} parent=1 // pred_region
      %184 = dma.done [#allocation3], 1024
    $region21: #{tpu_custom_call.1} parent=1 // pred_fallthru
      _
    %185 = vsyncpa [#allocation3], 1

</llo_original>
